<compile_context>
chip_gen: v7x
topology: tpu7x:2x2x1
jax: 0.10.0
libtpu: 0.0.40
codegen_flags: <defaults>
</compile_context>

<pallas_src>
import math
import jax
import jax.numpy as jnp
from jax.experimental import pallas as pl
from jax.experimental.pallas import tpu as pltpu


def mlp_kernel(x_ref, w0_ref, b0_ref, w1_ref, b1_ref, w2_ref, b2_ref, o_ref):
    bf16 = jnp.bfloat16
    f32 = jnp.float32
    # x arrives in f32; cast to bf16 in-kernel (free on the VPU, avoids an
    # extra HBM pass that a wrapper-side astype would cost).
    xb = x_ref[...].astype(bf16)
    # stem: Linear(inp, hidden) -> Tanh   (bf16 operands, f32 accumulate)
    h = jnp.tanh(
        jnp.dot(xb, w0_ref[...], preferred_element_type=f32) + b0_ref[...]
    )
    # shared hidden layer applied twice (hidden_num=2 reuses the same module)
    h = jnp.tanh(
        jnp.dot(h.astype(bf16), w1_ref[...], preferred_element_type=f32)
        + b1_ref[...]
    )
    h = jnp.tanh(
        jnp.dot(h.astype(bf16), w1_ref[...], preferred_element_type=f32)
        + b1_ref[...]
    )
    # last: Linear(hidden, out), no activation
    o_ref[...] = (
        jnp.dot(h.astype(bf16), w2_ref[...], preferred_element_type=f32)
        + b2_ref[...]
    ).astype(o_ref.dtype)


# Large tile cap: per-row compute is tiny, so fewer/larger grid steps win.
# At tile_b=8192, inp=32: f32 x tile = 1 MiB (x2 double-buffered), out tile
# 256 KiB (x2), weights ~13 KiB -> far inside VMEM on every generation
# (v7x's 64 MiB physical is NOT the limiter for this kernel).
_TILE_CAP = 8192


def _num_tensorcores():
    """2 on v7x (grid steps shard across TCs via 'parallel'), else 1."""
    try:
        kind = jax.devices()[0].device_kind.lower()
        if "v7" in kind or "tpu7" in kind or "tpu v7" in kind:
            return 2
    except Exception:
        pass
    return 1


def _round_up(v, m):
    return ((v + m - 1) // m) * m


def _choose_tile_b(B, num_tc):
    """Batch tile choice.

    Single-TC (v5e/v6e): one grid step when B <= cap (the grid is serial, so
    splitting only costs ~600 cyc/step for zero benefit).
    Two-TC (v7x): any B >= 16 gets an even number of grid steps so both
    TensorCores receive balanced work; partial tail blocks handle remainders.
    """
    if B <= 8:
        return B
    if num_tc <= 1:
        if B <= _TILE_CAP:
            return B
        steps = pl.cdiv(B, _TILE_CAP)
        return min(_round_up(pl.cdiv(B, steps), 8), B)
    # 2 TensorCores
    if B < 16:
        return B
    if B <= 2 * _TILE_CAP:
        tile = _round_up(pl.cdiv(B, 2), 8)
        return tile if tile < B else B
    steps = _round_up(pl.cdiv(B, _TILE_CAP), 2)  # even step count
    return min(_round_up(pl.cdiv(B, steps), 8), B)


def mlp_pallas(x, w0, b0, w1, b1, w2, b2, *, tile_b=None):
    B, inp = x.shape
    hidden = w0.shape[1]
    out = w2.shape[1]
    out_dtype = x.dtype

    bf16 = jnp.bfloat16
    f32 = jnp.float32
    # Weights/biases are expected pre-cast (bf16 / f32); only convert if not.
    w0b = w0 if w0.dtype == bf16 else w0.astype(bf16)
    w1b = w1 if w1.dtype == bf16 else w1.astype(bf16)
    w2b = w2 if w2.dtype == bf16 else w2.astype(bf16)
    b0f = b0 if b0.dtype == f32 else b0.astype(f32)
    b1f = b1 if b1.dtype == f32 else b1.astype(f32)
    b2f = b2 if b2.dtype == f32 else b2.astype(f32)

    if tile_b is None:
        tile_b = _choose_tile_b(B, _num_tensorcores())
    tile_b = max(1, min(int(tile_b), B))
    if tile_b < B and tile_b % 8 != 0:
        # block second-to-last dim must be a multiple of 8 (or equal to B)
        tile_b = max(8, (tile_b // 8) * 8)
        if tile_b >= B:
            tile_b = B

    grid = (pl.cdiv(B, tile_b),)  # partial tail block handled by Pallas

    # Advisory cost hint for XLA scheduling around the custom call.
    flops = 2 * B * (inp * hidden + 2 * hidden * hidden + hidden * out)
    transcendentals = 3 * B * hidden
    bytes_accessed = (
        B * inp * 4                                           # x (f32)
        + B * out * jnp.dtype(out_dtype).itemsize             # output
        + (inp * hidden + hidden * hidden + hidden * out) * 2  # weights bf16
        + (2 * hidden + out) * 4                               # biases f32
    )
    cost = pl.CostEstimate(
        flops=int(flops),
        transcendentals=int(transcendentals),
        bytes_accessed=int(bytes_accessed),
    )

    # Weights/biases are tiny: every grid step gets the full matrices;
    # only the batch dimension of x / o is tiled.
    full = lambda shape: pl.BlockSpec(shape, lambda i: (0, 0))
    y = pl.pallas_call(
        mlp_kernel,
        out_shape=jax.ShapeDtypeStruct((B, out), out_dtype),
        grid_spec=pltpu.PrefetchScalarGridSpec(
            num_scalar_prefetch=0,
            grid=grid,
            in_specs=[
                pl.BlockSpec((tile_b, inp), lambda i: (i, 0)),   # x tile (f32)
                full((inp, hidden)),                             # w0 (bf16)
                full((1, hidden)),                               # b0 (f32)
                full((hidden, hidden)),                          # w1 shared (bf16)
                full((1, hidden)),                               # b1 shared (f32)
                full((hidden, out)),                             # w2 last (bf16)
                full((1, out)),                                  # b2 last (f32)
            ],
            out_specs=pl.BlockSpec((tile_b, out), lambda i: (i, 0)),
        ),
        # "parallel" shards grid steps across TCs on v7x; a no-op on 1-TC chips.
        compiler_params=pltpu.CompilerParams(
            dimension_semantics=("parallel",)
        ),
        cost_estimate=cost,
    )(x, w0b, b0f, w1b, b1f, w2b, b2f)

    return y


def xavier_uniform(key, fan_in, fan_out, gain):
    # torch.nn.init.xavier_uniform_: U(-a, a), a = gain * sqrt(6/(fan_in+fan_out))
    bound = gain * math.sqrt(6.0 / (fan_in + fan_out))
    # [in, out] layout (already "transposed" relative to torch's [out, in]).
    return jax.random.uniform(
        key, (fan_in, fan_out), minval=-bound, maxval=bound, dtype=jnp.float32
    )


def make_mlp_params(key, inp_shape, out_shape, hidden_shape=64):
    """Parameters pre-cast once: bf16 weights (MXU operands), f32 biases."""
    gain_tanh = 5.0 / 3.0  # torch.nn.init.calculate_gain('tanh')
    k0, k1, k2 = jax.random.split(key, 3)
    w0 = xavier_uniform(k0, inp_shape, hidden_shape, gain_tanh).astype(jnp.bfloat16)
    b0 = jnp.zeros((1, hidden_shape), jnp.float32)
    w1 = xavier_uniform(k1, hidden_shape, hidden_shape, gain_tanh).astype(jnp.bfloat16)
    b1 = jnp.zeros((1, hidden_shape), jnp.float32)
    w2 = xavier_uniform(k2, hidden_shape, out_shape, gain_tanh / 100.0).astype(
        jnp.bfloat16
    )  # last=True -> gain / 100
    b2 = jnp.zeros((1, out_shape), jnp.float32)
    return w0, b0, w1, b1, w2, b2


def mlp_ref(x, w0, b0, w1, b1, w2, b2):
    """Pure-JAX reference mirroring the kernel's operand dtypes
    (bf16 matmul operands, f32 accumulation / bias / tanh)."""
    c = lambda a: a.astype(jnp.bfloat16).astype(jnp.float32)
    h = jnp.tanh(c(x) @ c(w0) + b0)
    h = jnp.tanh(c(h) @ c(w1) + b1)
    h = jnp.tanh(c(h) @ c(w1) + b1)  # shared hidden layer applied twice
    return c(h) @ c(w2) + b2


if __name__ == "__main__":
    INP, HID, OUT = 32, 64, 8
    key = jax.random.PRNGKey(0)
    kx, kp, kx2 = jax.random.split(key, 3)
    params = make_mlp_params(kp, INP, OUT, HID)

    # Small batch: single grid step on v5e/v6e, 2 balanced steps on v7x.
    B = 16
    x = jax.random.normal(kx, (B, INP), dtype=jnp.float32)
    out = jax.block_until_ready(mlp_pallas(x, *params))
    assert out.shape == (B, OUT)
    ref = mlp_ref(x, *params)
    assert jnp.allclose(out, ref, atol=1e-4, rtol=1e-3), "mismatch vs reference"

    # Non-divisible batch: handled by Pallas partial tail blocks (no pad copy).
    B2 = 20
    x2 = jax.random.normal(kx2, (B2, INP), dtype=jnp.float32)
    out2 = jax.block_until_ready(mlp_pallas(x2, *params, tile_b=8))
    assert out2.shape == (B2, OUT)
    ref2 = mlp_ref(x2, *params)
    assert jnp.allclose(out2, ref2, atol=1e-4, rtol=1e-3), "tail-batch mismatch"

    print("KERNEL_OK")
</pallas_src>

<mosaic_0001>
module attributes {stable_mosaic.version = 11 : i64} {
  func.func @mlp_kernel(%arg0: i32, %arg1: memref<16x32xf32, #tpu.memory_space<vmem>>, %arg2: memref<32x64xbf16, #tpu.memory_space<vmem>>, %arg3: memref<1x64xf32, #tpu.memory_space<vmem>>, %arg4: memref<64x64xbf16, #tpu.memory_space<vmem>>, %arg5: memref<1x64xf32, #tpu.memory_space<vmem>>, %arg6: memref<64x8xbf16, #tpu.memory_space<vmem>>, %arg7: memref<1x8xf32, #tpu.memory_space<vmem>>, %arg8: memref<16x8xf32, #tpu.memory_space<vmem>>) attributes {dimension_semantics = [#tpu.dimension_semantics<parallel>], iteration_bounds = array<i64: 1>, scalar_prefetch = 0 : i64, scratch_operands = 0 : i64, tpu.core_type = #tpu.core_type<tc>, window_params = [{transform_indices = @transform_0, window_bounds = array<i64: 16, 32>}, {pipeline_mode = #tpu.pipeline_mode<synchronous>, transform_indices = @transform_1, window_bounds = array<i64: 32, 64>}, {pipeline_mode = #tpu.pipeline_mode<synchronous>, transform_indices = @transform_2, window_bounds = array<i64: 1, 64>}, {pipeline_mode = #tpu.pipeline_mode<synchronous>, transform_indices = @transform_3, window_bounds = array<i64: 64, 64>}, {pipeline_mode = #tpu.pipeline_mode<synchronous>, transform_indices = @transform_4, window_bounds = array<i64: 1, 64>}, {pipeline_mode = #tpu.pipeline_mode<synchronous>, transform_indices = @transform_5, window_bounds = array<i64: 64, 8>}, {pipeline_mode = #tpu.pipeline_mode<synchronous>, transform_indices = @transform_6, window_bounds = array<i64: 1, 8>}, {transform_indices = @transform_7, window_bounds = array<i64: 16, 8>}]} {
    %c0 = arith.constant 0 : index
    %c0_0 = arith.constant 0 : index
    %0 = vector.load %arg1[%c0, %c0_0] : memref<16x32xf32, #tpu.memory_space<vmem>>, vector<16x32xf32>
    %1 = arith.truncf %0 : vector<16x32xf32> to vector<16x32xbf16>
    %c0_1 = arith.constant 0 : index
    %c0_2 = arith.constant 0 : index
    %2 = vector.load %arg2[%c0_1, %c0_2] : memref<32x64xbf16, #tpu.memory_space<vmem>>, vector<32x64xbf16>
    %cst = arith.constant dense<0.000000e+00> : vector<16x64xf32>
    %3 = tpu.matmul %1, %2, %cst {dimension_numbers = #tpu.dot_dimension_numbers<[1], [0], [0], [1], [0, 0, 1, 1], [], []>} : vector<16x32xbf16>, vector<32x64xbf16>, vector<16x64xf32> -> vector<16x64xf32>
    %c0_3 = arith.constant 0 : index
    %c0_4 = arith.constant 0 : index
    %4 = vector.load %arg3[%c0_3, %c0_4] : memref<1x64xf32, #tpu.memory_space<vmem>>, vector<1x64xf32>
    %5 = vector.broadcast %4 : vector<1x64xf32> to vector<16x64xf32>
    %6 = arith.addf %3, %5 : vector<16x64xf32>
    %7 = math.tanh %6 : vector<16x64xf32>
    %8 = arith.truncf %7 : vector<16x64xf32> to vector<16x64xbf16>
    %c0_5 = arith.constant 0 : index
    %c0_6 = arith.constant 0 : index
    %9 = vector.load %arg4[%c0_5, %c0_6] : memref<64x64xbf16, #tpu.memory_space<vmem>>, vector<64x64xbf16>
    %cst_7 = arith.constant dense<0.000000e+00> : vector<16x64xf32>
    %10 = tpu.matmul %8, %9, %cst_7 {dimension_numbers = #tpu.dot_dimension_numbers<[1], [0], [0], [1], [0, 0, 1, 1], [], []>} : vector<16x64xbf16>, vector<64x64xbf16>, vector<16x64xf32> -> vector<16x64xf32>
    %c0_8 = arith.constant 0 : index
    %c0_9 = arith.constant 0 : index
    %11 = vector.load %arg5[%c0_8, %c0_9] : memref<1x64xf32, #tpu.memory_space<vmem>>, vector<1x64xf32>
    %12 = vector.broadcast %11 : vector<1x64xf32> to vector<16x64xf32>
    %13 = arith.addf %10, %12 : vector<16x64xf32>
    %14 = math.tanh %13 : vector<16x64xf32>
    %15 = arith.truncf %14 : vector<16x64xf32> to vector<16x64xbf16>
    %c0_10 = arith.constant 0 : index
    %c0_11 = arith.constant 0 : index
    %16 = vector.load %arg4[%c0_10, %c0_11] : memref<64x64xbf16, #tpu.memory_space<vmem>>, vector<64x64xbf16>
    %cst_12 = arith.constant dense<0.000000e+00> : vector<16x64xf32>
    %17 = tpu.matmul %15, %16, %cst_12 {dimension_numbers = #tpu.dot_dimension_numbers<[1], [0], [0], [1], [0, 0, 1, 1], [], []>} : vector<16x64xbf16>, vector<64x64xbf16>, vector<16x64xf32> -> vector<16x64xf32>
    %c0_13 = arith.constant 0 : index
    %c0_14 = arith.constant 0 : index
    %18 = vector.load %arg5[%c0_13, %c0_14] : memref<1x64xf32, #tpu.memory_space<vmem>>, vector<1x64xf32>
    %19 = vector.broadcast %18 : vector<1x64xf32> to vector<16x64xf32>
    %20 = arith.addf %17, %19 : vector<16x64xf32>
    %21 = math.tanh %20 : vector<16x64xf32>
    %22 = arith.truncf %21 : vector<16x64xf32> to vector<16x64xbf16>
    %c0_15 = arith.constant 0 : index
    %c0_16 = arith.constant 0 : index
    %23 = vector.load %arg6[%c0_15, %c0_16] : memref<64x8xbf16, #tpu.memory_space<vmem>>, vector<64x8xbf16>
    %cst_17 = arith.constant dense<0.000000e+00> : vector<16x8xf32>
    %24 = tpu.matmul %22, %23, %cst_17 {dimension_numbers = #tpu.dot_dimension_numbers<[1], [0], [0], [1], [0, 0, 1, 1], [], []>} : vector<16x64xbf16>, vector<64x8xbf16>, vector<16x8xf32> -> vector<16x8xf32>
    %c0_18 = arith.constant 0 : index
    %c0_19 = arith.constant 0 : index
    %25 = vector.load %arg7[%c0_18, %c0_19] : memref<1x8xf32, #tpu.memory_space<vmem>>, vector<1x8xf32>
    %26 = vector.broadcast %25 : vector<1x8xf32> to vector<16x8xf32>
    %27 = arith.addf %24, %26 : vector<16x8xf32>
    %c0_20 = arith.constant 0 : index
    %c0_21 = arith.constant 0 : index
    %28 = vector.load %arg8[%c0_20, %c0_21] : memref<16x8xf32, #tpu.memory_space<vmem>>, vector<16x8xf32>
    tpu.vector_store %arg8[%c0_20, %c0_21], %27 {strides = array<i32>} : memref<16x8xf32, #tpu.memory_space<vmem>>, vector<16x8xf32>,
    return
  }
  func.func @transform_0(%arg0: i32) -> (i32, i32) {
    %c0_i32 = arith.constant 0 : i32
    %c0_i32_0 = arith.constant 0 : i32
    return %arg0, %c0_i32 : i32, i32
  }
  func.func @transform_1(%arg0: i32) -> (i32, i32) {
    %c0_i32 = arith.constant 0 : i32
    %c0_i32_0 = arith.constant 0 : i32
    %c0_i32_1 = arith.constant 0 : i32
    return %c0_i32, %c0_i32_0 : i32, i32
  }
  func.func @transform_2(%arg0: i32) -> (i32, i32) {
    %c0_i32 = arith.constant 0 : i32
    %c0_i32_0 = arith.constant 0 : i32
    %c0_i32_1 = arith.constant 0 : i32
    return %c0_i32, %c0_i32_0 : i32, i32
  }
  func.func @transform_3(%arg0: i32) -> (i32, i32) {
    %c0_i32 = arith.constant 0 : i32
    %c0_i32_0 = arith.constant 0 : i32
    %c0_i32_1 = arith.constant 0 : i32
    return %c0_i32, %c0_i32_0 : i32, i32
  }
  func.func @transform_4(%arg0: i32) -> (i32, i32) {
    %c0_i32 = arith.constant 0 : i32
    %c0_i32_0 = arith.constant 0 : i32
    %c0_i32_1 = arith.constant 0 : i32
    return %c0_i32, %c0_i32_0 : i32, i32
  }
  func.func @transform_5(%arg0: i32) -> (i32, i32) {
    %c0_i32 = arith.constant 0 : i32
    %c0_i32_0 = arith.constant 0 : i32
    %c0_i32_1 = arith.constant 0 : i32
    return %c0_i32, %c0_i32_0 : i32, i32
  }
  func.func @transform_6(%arg0: i32) -> (i32, i32) {
    %c0_i32 = arith.constant 0 : i32
    %c0_i32_0 = arith.constant 0 : i32
    %c0_i32_1 = arith.constant 0 : i32
    return %c0_i32, %c0_i32_0 : i32, i32
  }
  func.func @transform_7(%arg0: i32) -> (i32, i32) {
    %c0_i32 = arith.constant 0 : i32
    %c0_i32_0 = arith.constant 0 : i32
    return %arg0, %c0_i32 : i32, i32
  }
}

</mosaic_0001>

<llo_original>
// kernel: tpu_custom_call.1
$region0: #{tpu_custom_call.1}
  #allocation0 [shape = 'u32[]', space=smem, size = 0x4, offset = 0x4, fixed_abs, tag = 'smem constant byte address 0x4 - core index']
  #allocation1 [shape = 'u32[144,128]{1,0:T(1,128)}', space=vmem, size = 0x12000, scoped, tag = 'internal scratch']
  %s0 = inlined_call_operand.hbm [shape: f32[16,32], index: 0, kind: input, shape index: {}]
  %s1 = inlined_call_operand.hbm [shape: bf16[32,64], index: 1, kind: input, shape index: {}]
  %s2 = inlined_call_operand.vmem [shape: f32[1,64], index: 2, kind: input, shape index: {}]
  %s3 = inlined_call_operand.vmem [shape: bf16[64,64], index: 3, kind: input, shape index: {}]
  %s4 = inlined_call_operand.vmem [shape: f32[1,64], index: 4, kind: input, shape index: {}]
  %s5 = inlined_call_operand.vmem [shape: bf16[64,8], index: 5, kind: input, shape index: {}]
  %s6 = inlined_call_operand.vmem [shape: f32[1,8], index: 6, kind: input, shape index: {}]
  %s7 = inlined_call_operand.vmem [shape: f32[16,8], index: 7, kind: output, shape index: {}]
  %s8 = sld [smem:[#allocation0]]
  $region46: #{tpu_custom_call.1} parent=0
    _
  %s10 = ssub.s32 1, %s8
  %s11 = scalar_select 0, %s10, %s8
  $region1: #{tpu_custom_call.1} parent=0
    #allocation2 [shape = 'u8[8192]{0}', space=vmem, size = 0x2000, scoped, tag = 'input window, operand 0, single buffered']
    #allocation3 [shape = 's32[1]{0}', space=sflag, size = 0x4, scoped, tag = 'scoped memory for tpu_custom_call.1']
    #allocation4 [shape = 'u8[8192]{0}', space=vmem, size = 0x2000, scoped, tag = 'input window, operand 1, single buffered']
    #allocation5 [shape = 's32[1]{0}', space=sflag, size = 0x4, scoped, tag = 'scoped memory for tpu_custom_call.1']
    %12 = vsyncpa [#allocation3], 0
    %13 = vsyncpa [#allocation5], 0
    // Predicated region
    $region2: #{tpu_custom_call.1} parent=1 // pred_check
      _
    $region3: #{tpu_custom_call.1} parent=1 // pred_check_branch
      %15 = sbr.rel (0) target = $region5
    $region4: #{tpu_custom_call.1} parent=1 // pred_region
      %s17 = ssub.s32 256, 256
      %18 = vsyncadd [#allocation3], %s17
      %s19 = sshll.u32 [#allocation2], 4
      %s20 = int_to_ptr.vmem [resolvable:$true] %s19
      %25 = dma.hbm_to_vmem [thread:$0]  %s0, 256, %s20, [#allocation3], 128, 128, 8
    $region5: #{tpu_custom_call.1} parent=1 // pred_fallthru
      _
    // Predicated region
    $region6: #{tpu_custom_call.1} parent=1 // pred_check
      _
    $region7: #{tpu_custom_call.1} parent=1 // pred_check_branch
      %27 = sbr.rel (0) target = $region9
    $region8: #{tpu_custom_call.1} parent=1 // pred_region
      %s29 = ssub.s32 256, 256
      %30 = vsyncadd [#allocation5], %s29
      %s31 = sshll.u32 [#allocation4], 4
      %s32 = int_to_ptr.vmem [resolvable:$true] %s31
      %37 = dma.hbm_to_vmem [thread:$0]  %s1, 256, %s32, [#allocation5], 64, 64, 4
    $region9: #{tpu_custom_call.1} parent=1 // pred_fallthru
      _
    // Predicated region
    $region10: #{tpu_custom_call.1} parent=1 // pred_check
      _
    $region11: #{tpu_custom_call.1} parent=1 // pred_check_branch
      %39 = sbr.rel (0) target = $region13
    $region12: #{tpu_custom_call.1} parent=1 // pred_region
      _
    $region13: #{tpu_custom_call.1} parent=1 // pred_fallthru
      _
    // Predicated region
    $region14: #{tpu_custom_call.1} parent=1 // pred_check
      _
    $region15: #{tpu_custom_call.1} parent=1 // pred_check_branch
      %41 = sbr.rel (0) target = $region17
    $region16: #{tpu_custom_call.1} parent=1 // pred_region
      _
    $region17: #{tpu_custom_call.1} parent=1 // pred_fallthru
      _
    // Predicated region
    $region18: #{tpu_custom_call.1} parent=1 // pred_check
      _
    $region19: #{tpu_custom_call.1} parent=1 // pred_check_branch
      %43 = sbr.rel (0) target = $region21
    $region20: #{tpu_custom_call.1} parent=1 // pred_region
      _
    $region21: #{tpu_custom_call.1} parent=1 // pred_fallthru
      _
    // Predicated region
    $region22: #{tpu_custom_call.1} parent=1 // pred_check
      _
    $region23: #{tpu_custom_call.1} parent=1 // pred_check_branch
      %45 = sbr.rel (0) target = $region25
    $region24: #{tpu_custom_call.1} parent=1 // pred_region
      _
    $region25: #{tpu_custom_call.1} parent=1 // pred_fallthru
      _
    // Predicated region
    $region26: #{tpu_custom_call.1} parent=1 // pred_check
      _
    $region27: #{tpu_custom_call.1} parent=1 // pred_check_branch
      %47 = sbr.rel (0) target = $region29
    $region28: #{tpu_custom_call.1} parent=1 // pred_region
      _
    $region29: #{tpu_custom_call.1} parent=1 // pred_fallthru
      _
    // Predicated region
    $region30: #{tpu_custom_call.1} parent=1 // pred_check
      _
    $region31: #{tpu_custom_call.1} parent=1 // pred_check_branch
      %49 = sbr.rel (0) target = $region33
    $region32: #{tpu_custom_call.1} parent=1 // pred_region
      %50 = dma.done [#allocation3], 256
    $region33: #{tpu_custom_call.1} parent=1 // pred_fallthru
      _
    // Predicated region
    $region34: #{tpu_custom_call.1} parent=1 // pred_check
      _
    $region35: #{tpu_custom_call.1} parent=1 // pred_check_branch
      %52 = sbr.rel (0) target = $region37
    $region36: #{tpu_custom_call.1} parent=1 // pred_region
      %53 = dma.done [#allocation5], 256
    $region37: #{tpu_custom_call.1} parent=1 // pred_fallthru
      _
    %v55 = vld [vmem:[#allocation2] sm:$0xff]
    %v56 = vld [vmem:[#allocation2 + $0x8] sm:$0xff]
    %v57 = vpack.c.bf16 %v56, %v55
    %v58 = vld [vmem:[#allocation4] sm:$0xf]
    %v59 = vld [vmem:[#allocation4 + $0x4] sm:$0xf]
    %v60 = vld [vmem:[#allocation4 + $0x8] sm:$0xf]
    %v61 = vld [vmem:[#allocation4 + $0xc] sm:$0xf]
    %v62 = vld [vmem:[%s2] sm:$0x1]
    %v64 = vlaneseq
    %v65 = vshrl.u32 %v64, 7
    %v66 = vsub.s32 0, %v65
    %v67 = vrot.slane %v62, %v66
    %v73 = vunpack.c.l.b16 %v58
    %v74 = vunpack.c.l.b16 %v59
    %v75 = vunpack.c.l.b16 %v60
    %v76 = vunpack.c.l.b16 %v61
    %v77 = vpack.c.b16 %v74, %v73
    %v78 = vpack.c.b16 %v76, %v75
    %vm81 = vcmask 261120
    %v83 = vsel %vm81, %v57, 0
    %85 = vmatprep.subr.bf16.mxu0 0
    %86 = vmatpush1.bf16.msra.mxu0 %v77
    %87 = vmatprep.subr.bf16.mxu0 0
    %88 = vmatpush1.bf16.msra.mxu0 %v78
    %89 = vmatprep.subr.bf16.mxu0 0
    %90 = vmatpush1.bf16.msra.mxu0 0
    %91 = vmatprep.subr.bf16.mxu0 0
    %92 = vmatpush1.bf16.msra.mxu0 0
    %93 = vmatprep.subr.bf16.mxu0 0
    %94 = vmatpush1.bf16.msra.mxu0 0
    %95 = vmatprep.subr.bf16.mxu0 0
    %96 = vmatpush1.bf16.msra.mxu0 0
    %97 = vmatprep.subr.bf16.mxu0 0
    %98 = vmatpush1.bf16.msra.mxu0 0
    %99 = vmatprep.subr.bf16.mxu0 0
    %100 = vmatpush1.bf16.msra.mxu0 0
    %101 = vmatprep.subr.bf16.mxu0 0
    %102 = vmatpush1.bf16.msra.mxu0 0
    %103 = vmatprep.subr.bf16.mxu0 0
    %104 = vmatpush1.bf16.msra.mxu0 0
    %105 = vmatprep.subr.bf16.mxu0 0
    %106 = vmatpush1.bf16.msra.mxu0 0
    %107 = vmatprep.subr.bf16.mxu0 0
    %108 = vmatpush1.bf16.msra.mxu0 0
    %109 = vmatprep.subr.bf16.mxu0 0
    %110 = vmatpush1.bf16.msra.mxu0 0
    %111 = vmatprep.subr.bf16.mxu0 0
    %112 = vmatpush1.bf16.msra.mxu0 0
    %113 = vmatprep.subr.bf16.mxu0 0
    %114 = vmatpush1.bf16.msra.mxu0 0
    %115 = vmatprep.subr.bf16.mxu0 0
    %116 = vmatpush1.bf16.msra.mxu0 0
    %117 = vmatprep.mubr.bf16.mxu0 0
    %118 = vmatmul.mubr.bf16.gmra.mrb[0].mxu0 %v83
    %v119 = vpop.f32.mrb[0].mxu0
    %v120 = vadd.f32 %v67, %v119
    %v121 = vpop.f32.mrb[0].mxu0
    %v122 = vpop.f32.mrb[0].mxu0
    %v123 = vadd.f32 %v67, %v122
    %v124 = vpop.f32.mrb[0].mxu0
    %125 = vdwg.mxu0
    %v126 = vtanh.pop %v120
    %v127 = vtanh.pop %v123
    %v128 = vpack.c.bf16 %v127, %v126
    %v129 = vld [vmem:[%s3] sm:$0xf]
    %v130 = vld [vmem:[%s3 + $0x4] sm:$0xf]
    %v131 = vld [vmem:[%s3 + $0x8] sm:$0xf]
    %v132 = vld [vmem:[%s3 + $0xc] sm:$0xf]
    %v133 = vld [vmem:[%s3 + $0x10] sm:$0xf]
    %v134 = vld [vmem:[%s3 + $0x14] sm:$0xf]
    %v135 = vld [vmem:[%s3 + $0x18] sm:$0xf]
    %v136 = vld [vmem:[%s3 + $0x1c] sm:$0xf]
    %v137 = vld [vmem:[%s4] sm:$0x1]
    %v139 = vlaneseq
    %v140 = vshrl.u32 %v139, 7
    %v141 = vsub.s32 0, %v140
    %v142 = vrot.slane %v137, %v141
    %v152 = vunpack.c.l.b16 %v129
    %v153 = vunpack.c.l.b16 %v130
    %v154 = vunpack.c.l.b16 %v131
    %v155 = vunpack.c.l.b16 %v132
    %v156 = vunpack.c.l.b16 %v133
    %v157 = vunpack.c.l.b16 %v134
    %v158 = vunpack.c.l.b16 %v135
    %v159 = vunpack.c.l.b16 %v136
    %v160 = vpack.c.b16 %v153, %v152
    %v161 = vpack.c.b16 %v155, %v154
    %v162 = vpack.c.b16 %v157, %v156
    %v163 = vpack.c.b16 %v159, %v158
    %vm168 = vcmask 523264
    %v170 = vsel %vm168, %v128, 0
    %172 = vmatprep.subr.bf16.mxu0 0
    %173 = vmatpush1.bf16.msra.mxu0 %v160
    %174 = vmatprep.subr.bf16.mxu0 0
    %175 = vmatpush1.bf16.msra.mxu0 %v161
    %176 = vmatprep.subr.bf16.mxu0 0
    %177 = vmatpush1.bf16.msra.mxu0 %v162
    %178 = vmatprep.subr.bf16.mxu0 0
    %179 = vmatpush1.bf16.msra.mxu0 %v163
    %180 = vmatprep.subr.bf16.mxu0 0
    %181 = vmatpush1.bf16.msra.mxu0 0
    %182 = vmatprep.subr.bf16.mxu0 0
    %183 = vmatpush1.bf16.msra.mxu0 0
    %184 = vmatprep.subr.bf16.mxu0 0
    %185 = vmatpush1.bf16.msra.mxu0 0
    %186 = vmatprep.subr.bf16.mxu0 0
    %187 = vmatpush1.bf16.msra.mxu0 0
    %188 = vmatprep.subr.bf16.mxu0 0
    %189 = vmatpush1.bf16.msra.mxu0 0
    %190 = vmatprep.subr.bf16.mxu0 0
    %191 = vmatpush1.bf16.msra.mxu0 0
    %192 = vmatprep.subr.bf16.mxu0 0
    %193 = vmatpush1.bf16.msra.mxu0 0
    %194 = vmatprep.subr.bf16.mxu0 0
    %195 = vmatpush1.bf16.msra.mxu0 0
    %196 = vmatprep.subr.bf16.mxu0 0
    %197 = vmatpush1.bf16.msra.mxu0 0
    %198 = vmatprep.subr.bf16.mxu0 0
    %199 = vmatpush1.bf16.msra.mxu0 0
    %200 = vmatprep.subr.bf16.mxu0 0
    %201 = vmatpush1.bf16.msra.mxu0 0
    %202 = vmatprep.subr.bf16.mxu0 0
    %203 = vmatpush1.bf16.msra.mxu0 0
    %204 = vmatprep.mubr.bf16.mxu0 0
    %205 = vmatmul.mubr.bf16.gmra.mrb[0].mxu0 %v170
    %v206 = vpop.f32.mrb[0].mxu0
    %v207 = vadd.f32 %v142, %v206
    %v208 = vpop.f32.mrb[0].mxu0
    %v209 = vpop.f32.mrb[0].mxu0
    %v210 = vadd.f32 %v142, %v209
    %v211 = vpop.f32.mrb[0].mxu0
    %212 = vdwg.mxu0
    %v213 = vtanh.pop %v207
    %v214 = vtanh.pop %v210
    %v215 = vpack.c.bf16 %v214, %v213
    %v217 = vsel %vm168, %v215, 0
    %219 = vmatprep.subr.bf16.mxu0 0
    %220 = vmatpush1.bf16.msra.mxu0 %v160
    %221 = vmatprep.subr.bf16.mxu0 0
    %222 = vmatpush1.bf16.msra.mxu0 %v161
    %223 = vmatprep.subr.bf16.mxu0 0
    %224 = vmatpush1.bf16.msra.mxu0 %v162
    %225 = vmatprep.subr.bf16.mxu0 0
    %226 = vmatpush1.bf16.msra.mxu0 %v163
    %227 = vmatprep.subr.bf16.mxu0 0
    %228 = vmatpush1.bf16.msra.mxu0 0
    %229 = vmatprep.subr.bf16.mxu0 0
    %230 = vmatpush1.bf16.msra.mxu0 0
    %231 = vmatprep.subr.bf16.mxu0 0
    %232 = vmatpush1.bf16.msra.mxu0 0
    %233 = vmatprep.subr.bf16.mxu0 0
    %234 = vmatpush1.bf16.msra.mxu0 0
    %235 = vmatprep.subr.bf16.mxu0 0
    %236 = vmatpush1.bf16.msra.mxu0 0
    %237 = vmatprep.subr.bf16.mxu0 0
    %238 = vmatpush1.bf16.msra.mxu0 0
    %239 = vmatprep.subr.bf16.mxu0 0
    %240 = vmatpush1.bf16.msra.mxu0 0
    %241 = vmatprep.subr.bf16.mxu0 0
    %242 = vmatpush1.bf16.msra.mxu0 0
    %243 = vmatprep.subr.bf16.mxu0 0
    %244 = vmatpush1.bf16.msra.mxu0 0
    %245 = vmatprep.subr.bf16.mxu0 0
    %246 = vmatpush1.bf16.msra.mxu0 0
    %247 = vmatprep.subr.bf16.mxu0 0
    %248 = vmatpush1.bf16.msra.mxu0 0
    %249 = vmatprep.subr.bf16.mxu0 0
    %250 = vmatpush1.bf16.msra.mxu0 0
    %251 = vmatprep.mubr.bf16.mxu0 0
    %252 = vmatmul.mubr.bf16.gmra.mrb[0].mxu0 %v217
    %v253 = vpop.f32.mrb[0].mxu0
    %v254 = vadd.f32 %v142, %v253
    %v255 = vpop.f32.mrb[0].mxu0
    %v256 = vpop.f32.mrb[0].mxu0
    %v257 = vadd.f32 %v142, %v256
    %v258 = vpop.f32.mrb[0].mxu0
    %259 = vdwg.mxu0
    %v260 = vtanh.pop %v254
    %v261 = vtanh.pop %v257
    %v262 = vpack.c.bf16 %v261, %v260
    %v263 = vld [vmem:[%s5] sm:$0xf]
    %v264 = vld [vmem:[%s5 + $0x4] sm:$0xf]
    %v265 = vld [vmem:[%s5 + $0x8] sm:$0xf]
    %v266 = vld [vmem:[%s5 + $0xc] sm:$0xf]
    %v267 = vld [vmem:[%s5 + $0x10] sm:$0xf]
    %v268 = vld [vmem:[%s5 + $0x14] sm:$0xf]
    %v269 = vld [vmem:[%s5 + $0x18] sm:$0xf]
    %v270 = vld [vmem:[%s5 + $0x1c] sm:$0xf]
    %v271 = vld [vmem:[%s6] sm:$0x1]
    %v273 = vlaneseq
    %v274 = vshrl.u32 %v273, 7
    %v275 = vsub.s32 0, %v274
    %v276 = vrot.slane %v271, %v275
    %v286 = vunpack.c.l.b16 %v263
    %v287 = vunpack.c.l.b16 %v264
    %v288 = vunpack.c.l.b16 %v265
    %v289 = vunpack.c.l.b16 %v266
    %v290 = vunpack.c.l.b16 %v267
    %v291 = vunpack.c.l.b16 %v268
    %v292 = vunpack.c.l.b16 %v269
    %v293 = vunpack.c.l.b16 %v270
    %v294 = vpack.c.b16 %v287, %v286
    %v295 = vpack.c.b16 %v289, %v288
    %v296 = vpack.c.b16 %v291, %v290
    %v297 = vpack.c.b16 %v293, %v292
    %v303 = vsel %vm168, %v262, 0
    %305 = vmatprep.subr.bf16.mxu0 0
    %306 = vmatpush1.bf16.msra.mxu0 %v294
    %307 = vmatprep.subr.bf16.mxu0 0
    %308 = vmatpush1.bf16.msra.mxu0 %v295
    %309 = vmatprep.subr.bf16.mxu0 0
    %310 = vmatpush1.bf16.msra.mxu0 %v296
    %311 = vmatprep.subr.bf16.mxu0 0
    %312 = vmatpush1.bf16.msra.mxu0 %v297
    %313 = vmatprep.subr.bf16.mxu0 0
    %314 = vmatpush1.bf16.msra.mxu0 0
    %315 = vmatprep.subr.bf16.mxu0 0
    %316 = vmatpush1.bf16.msra.mxu0 0
    %317 = vmatprep.subr.bf16.mxu0 0
    %318 = vmatpush1.bf16.msra.mxu0 0
    %319 = vmatprep.subr.bf16.mxu0 0
    %320 = vmatpush1.bf16.msra.mxu0 0
    %321 = vmatprep.subr.bf16.mxu0 0
    %322 = vmatpush1.bf16.msra.mxu0 0
    %323 = vmatprep.subr.bf16.mxu0 0
    %324 = vmatpush1.bf16.msra.mxu0 0
    %325 = vmatprep.subr.bf16.mxu0 0
    %326 = vmatpush1.bf16.msra.mxu0 0
    %327 = vmatprep.subr.bf16.mxu0 0
    %328 = vmatpush1.bf16.msra.mxu0 0
    %329 = vmatprep.subr.bf16.mxu0 0
    %330 = vmatpush1.bf16.msra.mxu0 0
    %331 = vmatprep.subr.bf16.mxu0 0
    %332 = vmatpush1.bf16.msra.mxu0 0
    %333 = vmatprep.subr.bf16.mxu0 0
    %334 = vmatpush1.bf16.msra.mxu0 0
    %335 = vmatprep.subr.bf16.mxu0 0
    %336 = vmatpush1.bf16.msra.mxu0 0
    %337 = vmatprep.mubr.bf16.mxu0 0
    %338 = vmatmul.mubr.bf16.gmra.mrb[0].mxu0 %v303
    %v339 = vpop.f32.mrb[0].mxu0
    %v340 = vadd.f32 %v276, %v339
    %v341 = vpop.f32.mrb[0].mxu0
    %v342 = vpop.f32.mrb[0].mxu0
    %v343 = vadd.f32 %v276, %v342
    %v344 = vpop.f32.mrb[0].mxu0
    %345 = vdwg.mxu0
    %vm346 = vcmask 64512
    %347 = vst.msk [vmem:[%s7] sm:$0xff] %vm346, %v340
    %348 = vst.msk [vmem:[%s7 + $0x8] sm:$0xff] %vm346, %v343
    // Predicated region
    $region38: #{tpu_custom_call.1} parent=1 // pred_check
      _
    $region39: #{tpu_custom_call.1} parent=1 // pred_check_branch
      %350 = sbr.rel (0) target = $region41
    $region40: #{tpu_custom_call.1} parent=1 // pred_region
      _
    $region41: #{tpu_custom_call.1} parent=1 // pred_fallthru
      _
    // Predicated region
    $region42: #{tpu_custom_call.1} parent=1 // pred_check
      _
    $region43: #{tpu_custom_call.1} parent=1 // pred_check_branch
      %352 = sbr.rel (0) target = $region45
    $region44: #{tpu_custom_call.1} parent=1 // pred_region
      _
    $region45: #{tpu_custom_call.1} parent=1 // pred_fallthru
      _
    %353 = vsyncpa [#allocation3], 1
    %354 = vsyncpa [#allocation5], 1

</llo_original>
